<compile_context>
chip_gen: v5e
topology: v5e:2x2
jax: 0.10.0
libtpu: 0.0.40
codegen_flags: <defaults>
</compile_context>

<pallas_src>
import functools

import jax
import jax.numpy as jnp
from jax.experimental import pallas as pl
from jax.experimental.pallas import tpu as pltpu


def _modconv_kernel(patch_ref, w_ref, denom_ref, out_ref):
    """One grid step == (c_out tile, batch sample, spatial tile).

    patch_ref: (1, KC, TP)   modulated im2col slab tile (lane-dense spatial axis)
    w_ref:     (TCO, KC)     shared flattened conv weight (static across n, p)
    denom_ref: (1, TCO, 1)   f32 per-sample demodulation scale
    out_ref:   (1, TCO, TP)  lane-dense output slab tile
    """
    acc = jnp.dot(w_ref[...], patch_ref[0],
                  preferred_element_type=jnp.float32)          # (TCO, TP) MXU
    out_ref[0] = (acc * denom_ref[0]).astype(out_ref.dtype)    # (TCO,1) bcast scale


def _auto_tiles(c_out, kc, p_tot, in_bytes, out_bytes, tile_cout, tile_p,
                vmem_budget=40 * 1024 * 1024, max_tp=2048):
    """Pick (tco, tp) from a double-buffered VMEM budget.

    Prefer tco == c_out (weight resident, slab streamed exactly once); tile only
    the spatial axis, in multiples of 128 lanes.
    """
    tco = c_out if tile_cout is None else tile_cout
    if tile_cout is None:
        # Shrink c_out tile only if the weight block alone would eat most of the budget.
        while tco > 8 and tco % 2 == 0 and 2 * tco * kc * in_bytes > vmem_budget // 2:
            tco //= 2
    assert c_out % tco == 0, "tile_cout must divide c_out"

    if tile_p is not None:
        tp = tile_p
    else:
        fixed = 2 * (tco * kc * in_bytes + tco * 4)            # weight + denom (dbl-buf)
        per_lane = 2 * (kc * in_bytes + tco * out_bytes)       # slab + out per lane
        avail = max(vmem_budget - fixed, 0)
        tp = avail // per_lane
        tp = min(tp, max_tp, pl.cdiv(p_tot, 128) * 128)
        tp = max(128, (tp // 128) * 128)
    assert tp % 128 == 0, "tile_p must be a multiple of 128 lanes"
    return tco, tp


def modulated_conv2d(x, s, conv_weight, w_style, b_style, *,
                     stride=1, padding=1, eps=1e-6,
                     tile_cout=None, tile_p=None,
                     mxu_dtype=jnp.bfloat16):
    """Pallas implementation of ModulatedConv2d.forward.

    x:           (N, C_in, H, W)       NCHW
    s:           (N, s_dim)
    conv_weight: (1, C_out, C_in, kH, kW)
    w_style:     (s_dim, C_in)   (transposed nn.Linear weight)
    b_style:     (C_in,)
    returns:     (N, C_out, H_out, W_out)
    """
    n_b, c_in, h, w = x.shape
    _, c_out, _, k_h, k_w = conv_weight.shape
    s_h, s_w = (stride, stride) if isinstance(stride, int) else stride
    p_h, p_w = (padding, padding) if isinstance(padding, int) else padding
    h_out = (h + 2 * p_h - k_h) // s_h + 1
    w_out = (w + 2 * p_w - k_w) // s_w + 1
    p_tot = h_out * w_out
    kc = k_h * k_w * c_in

    in_bytes = jnp.dtype(mxu_dtype).itemsize
    out_bytes = jnp.dtype(x.dtype).itemsize

    # ---- glue (XLA, fused): style linear, im2col, modulation, demod denom ----
    style = (s @ w_style + b_style).astype(jnp.float32)                 # (N, c_in)
    style_kc = jnp.tile(style, (1, k_h * k_w))                          # (N, KC) row r -> style[c]

    x_pad = jnp.pad(x, ((0, 0), (0, 0), (p_h, p_h), (p_w, p_w)))
    taps = []
    for i in range(k_h):
        for j in range(k_w):
            taps.append(jax.lax.slice(
                x_pad,
                (0, 0, i, j),
                (n_b, c_in, i + s_h * (h_out - 1) + 1, j + s_w * (w_out - 1) + 1),
                (1, 1, s_h, s_w)))                                      # (N, c_in, h_out, w_out)
    patch = jnp.stack(taps, axis=1).reshape(n_b, kc, p_tot)             # (N, KC, P)

    # Modulation hoisted: scale input rows so the weight stays static (bf16 for MXU).
    mod = (patch.astype(jnp.float32) * style_kc[:, :, None]).astype(mxu_dtype)

    # (c_out, KC) with column order r = (i*k_w + j)*c_in + c, matching patch rows.
    w_flat_f32 = jnp.transpose(conv_weight[0], (0, 2, 3, 1)).reshape(c_out, kc)
    w_flat_f32 = w_flat_f32.astype(jnp.float32)
    w_flat = w_flat_f32.astype(mxu_dtype)

    # Demodulation hoisted to XLA (f32): ssum[n,o] = sum_r w[o,r]^2 * style_kc[n,r]^2.
    ssum = jnp.einsum("or,nr->no", w_flat_f32 * w_flat_f32, style_kc * style_kc)
    denom = jax.lax.rsqrt(ssum + eps).reshape(n_b, c_out, 1)            # (N, c_out, 1) f32

    # ---- tiling: lane-dense spatial tiles (x128), weight kept whole-extent ----
    tco, tp = _auto_tiles(c_out, kc, p_tot, in_bytes, out_bytes, tile_cout, tile_p)
    pp = pl.cdiv(p_tot, tp) * tp
    if pp != p_tot:
        mod = jnp.pad(mod, ((0, 0), (0, 0), (0, pp - p_tot)))           # zero lanes, sliced later

    grid = (c_out // tco, n_b, pp // tp)   # co outermost -> weight re-fetched at most c_out/tco times

    vmem_need = 2 * (kc * tp * in_bytes + tco * kc * in_bytes + tco * 4
                     + tco * tp * out_bytes)
    vmem_limit = int(min(56 * 2**20, max(32 * 2**20, vmem_need * 3 // 2)))

    cost = pl.CostEstimate(
        flops=2 * n_b * c_out * kc * pp,
        transcendentals=0,
        bytes_accessed=(n_b * kc * pp * in_bytes + c_out * kc * in_bytes
                        + n_b * c_out * 4 + n_b * c_out * pp * out_bytes))

    out_flat = pl.pallas_call(
        _modconv_kernel,
        out_shape=jax.ShapeDtypeStruct((n_b, c_out, pp), x.dtype),
        grid=grid,
        in_specs=[
            pl.BlockSpec((1, kc, tp), lambda co, n, p: (n, 0, p)),      # modulated slab tile
            pl.BlockSpec((tco, kc), lambda co, n, p: (co, 0)),          # shared weight (resident)
            pl.BlockSpec((1, tco, 1), lambda co, n, p: (n, co, 0)),     # demod scale
        ],
        out_specs=pl.BlockSpec((1, tco, tp), lambda co, n, p: (n, co, p)),
        compiler_params=pltpu.CompilerParams(
            dimension_semantics=("parallel", "parallel", "parallel"),
            vmem_limit_bytes=vmem_limit),
        cost_estimate=cost,
    )(mod, w_flat, denom)

    out_flat = out_flat[:, :, :p_tot]                                   # drop lane padding
    return out_flat.reshape(n_b, c_out, h_out, w_out)


def _reference(x, s, conv_weight, w_style, b_style, *, stride=1, padding=1, eps=1e-6):
    """Pure-JAX reference reproducing the PyTorch forward exactly."""
    n_b, c_in, h, w = x.shape
    _, c_out, _, k_h, k_w = conv_weight.shape
    s_h, s_w = (stride, stride) if isinstance(stride, int) else stride
    p_h, p_w = (padding, padding) if isinstance(padding, int) else padding
    style = s @ w_style + b_style                                       # (N, c_in)
    w_dot = conv_weight * style[:, None, :, None, None]                 # (N, c_out, c_in, kh, kw)
    w_dd = w_dot / jnp.sqrt(jnp.sum(w_dot ** 2, axis=(2, 3, 4), keepdims=True) + eps)
    x_r = x.reshape(1, n_b * c_in, h, w)
    kern = w_dd.reshape(n_b * c_out, c_in, k_h, k_w)
    out = jax.lax.conv_general_dilated(
        x_r, kern, window_strides=(s_h, s_w),
        padding=((p_h, p_h), (p_w, p_w)),
        feature_group_count=n_b,
        dimension_numbers=("NCHW", "OIHW", "NCHW"))
    return out.reshape(n_b, c_out, out.shape[2], out.shape[3])


if __name__ == "__main__":
    # small shapes consistent with the module's forward
    N, S_DIM, C_IN, C_OUT, H, W = 2, 8, 4, 8, 16, 16
    K, PAD = 3, 1

    key = jax.random.PRNGKey(0)
    kx, ks, kw, kws, kbs = jax.random.split(key, 5)

    x = jax.random.normal(kx, (N, C_IN, H, W), jnp.float32)
    s = jax.random.normal(ks, (N, S_DIM), jnp.float32)
    # deterministic parameter init (matches __init__ shapes; synthetic, no checkpoint)
    conv_weight = jax.random.normal(kw, (1, C_OUT, C_IN, K, K), jnp.float32)
    w_style = jax.random.normal(kws, (S_DIM, C_IN), jnp.float32) * 0.1
    b_style = jax.random.normal(kbs, (C_IN,), jnp.float32) * 0.1

    ref = _reference(x, s, conv_weight, w_style, b_style, stride=1, padding=PAD)

    # Exact-math check (f32 MXU operands).
    out_f32 = jax.block_until_ready(
        modulated_conv2d(x, s, conv_weight, w_style, b_style,
                         stride=1, padding=PAD, mxu_dtype=jnp.float32))
    assert out_f32.shape == (N, C_OUT, H, W), out_f32.shape
    assert jnp.allclose(out_f32, ref, atol=1e-3, rtol=1e-3), \
        float(jnp.max(jnp.abs(out_f32 - ref)))

    # Default fast path (bf16 MXU operands, f32 accumulation / demod) — looser tolerance.
    out_bf16 = jax.block_until_ready(
        modulated_conv2d(x, s, conv_weight, w_style, b_style, stride=1, padding=PAD))
    assert out_bf16.shape == (N, C_OUT, H, W), out_bf16.shape
    assert jnp.allclose(out_bf16, ref, atol=1e-1, rtol=1e-1), \
        float(jnp.max(jnp.abs(out_bf16 - ref)))

    # stride-2 sanity check (odd P -> lane padding path, strided taps in wrapper).
    out2 = jax.block_until_ready(
        modulated_conv2d(x, s, conv_weight, w_style, b_style,
                         stride=2, padding=PAD, mxu_dtype=jnp.float32))
    ref2 = _reference(x, s, conv_weight, w_style, b_style, stride=2, padding=PAD)
    assert out2.shape == ref2.shape, (out2.shape, ref2.shape)
    assert jnp.allclose(out2, ref2, atol=1e-3, rtol=1e-3), \
        float(jnp.max(jnp.abs(out2 - ref2)))

    print("KERNEL_OK")
</pallas_src>

<mosaic_0001>
module attributes {stable_mosaic.version = 11 : i64} {
  func.func @_modconv_kernel(%arg0: i32, %arg1: i32, %arg2: i32, %arg3: memref<1x36x256xf32, #tpu.memory_space<vmem>>, %arg4: memref<8x36xf32, #tpu.memory_space<vmem>>, %arg5: memref<1x8x1xf32, #tpu.memory_space<vmem>>, %arg6: memref<1x8x256xf32, #tpu.memory_space<vmem>>) attributes {dimension_semantics = [#tpu.dimension_semantics<parallel>, #tpu.dimension_semantics<parallel>, #tpu.dimension_semantics<parallel>], iteration_bounds = array<i64: 1, 2, 1>, scalar_prefetch = 0 : i64, scratch_operands = 0 : i64, tpu.core_type = #tpu.core_type<tc>, window_params = [{transform_indices = @transform_0, window_bounds = array<i64: 1, 36, 256>}, {transform_indices = @transform_1, window_bounds = array<i64: 8, 36>}, {transform_indices = @transform_2, window_bounds = array<i64: 1, 8, 1>}, {transform_indices = @transform_3, window_bounds = array<i64: 1, 8, 256>}]} {
    %c0 = arith.constant 0 : index
    %c0_0 = arith.constant 0 : index
    %0 = vector.load %arg4[%c0, %c0_0] : memref<8x36xf32, #tpu.memory_space<vmem>>, vector<8x36xf32>
    %c0_1 = arith.constant 0 : index
    %c0_2 = arith.constant 0 : index
    %c0_3 = arith.constant 0 : index
    %1 = vector.load %arg3[%c0_1, %c0_2, %c0_3] : memref<1x36x256xf32, #tpu.memory_space<vmem>>, vector<1x36x256xf32>
    %2 = vector.shape_cast %1 : vector<1x36x256xf32> to vector<36x256xf32>
    %cst = arith.constant dense<0.000000e+00> : vector<8x256xf32>
    %3 = tpu.matmul %0, %2, %cst {dimension_numbers = #tpu.dot_dimension_numbers<[1], [0], [0], [1], [0, 0, 1, 1], [], []>} : vector<8x36xf32>, vector<36x256xf32>, vector<8x256xf32> -> vector<8x256xf32>
    %c0_4 = arith.constant 0 : index
    %c0_5 = arith.constant 0 : index
    %c0_6 = arith.constant 0 : index
    %4 = vector.load %arg5[%c0_4, %c0_5, %c0_6] : memref<1x8x1xf32, #tpu.memory_space<vmem>>, vector<1x8x1xf32>
    %5 = vector.shape_cast %4 : vector<1x8x1xf32> to vector<8x1xf32>
    %6 = vector.broadcast %5 : vector<8x1xf32> to vector<8x256xf32>
    %7 = arith.mulf %3, %6 : vector<8x256xf32>
    %c0_7 = arith.constant 0 : index
    %c0_8 = arith.constant 0 : index
    %c0_9 = arith.constant 0 : index
    %8 = vector.load %arg6[%c0_7, %c0_8, %c0_9] : memref<1x8x256xf32, #tpu.memory_space<vmem>>, vector<1x8x256xf32>
    %9 = vector.shape_cast %8 : vector<1x8x256xf32> to vector<8x256xf32>
    %10 = vector.shape_cast %7 : vector<8x256xf32> to vector<1x8x256xf32>
    tpu.vector_store %arg6[%c0_7, %c0_8, %c0_9], %10 {strides = array<i32>} : memref<1x8x256xf32, #tpu.memory_space<vmem>>, vector<1x8x256xf32>,
    return
  }
  func.func @transform_0(%arg0: i32, %arg1: i32, %arg2: i32) -> (i32, i32, i32) {
    %c0_i32 = arith.constant 0 : i32
    %c0_i32_0 = arith.constant 0 : i32
    return %arg1, %c0_i32, %arg2 : i32, i32, i32
  }
  func.func @transform_1(%arg0: i32, %arg1: i32, %arg2: i32) -> (i32, i32) {
    %c0_i32 = arith.constant 0 : i32
    %c0_i32_0 = arith.constant 0 : i32
    return %arg0, %c0_i32 : i32, i32
  }
  func.func @transform_2(%arg0: i32, %arg1: i32, %arg2: i32) -> (i32, i32, i32) {
    %c0_i32 = arith.constant 0 : i32
    %c0_i32_0 = arith.constant 0 : i32
    return %arg1, %arg0, %c0_i32 : i32, i32, i32
  }
  func.func @transform_3(%arg0: i32, %arg1: i32, %arg2: i32) -> (i32, i32, i32) {
    %c0_i32 = arith.constant 0 : i32
    return %arg1, %arg0, %arg2 : i32, i32, i32
  }
}

</mosaic_0001>

<llo_original>
// kernel: tpu_custom_call.1
$region0: #{tpu_custom_call.1}
  #allocation0 [shape = 'u32[]', space=smem, size = 0x4, offset = 0x4, fixed_abs, tag = 'smem constant byte address 0x4 - core index']
  #allocation1 [shape = 'u32[72,128]{1,0:T(1,128)}', space=vmem, size = 0x9000, scoped, tag = 'internal scratch']
  %s0 = inlined_call_operand.vmem [shape: f32[2,36,256], index: 0, kind: input, shape index: {}]
  %s1 = inlined_call_operand.vmem [shape: f32[8,36], index: 1, kind: input, shape index: {}]
  %s2 = inlined_call_operand.vmem [shape: f32[2,8,1], index: 2, kind: input, shape index: {}]
  %s3 = inlined_call_operand.hbm [shape: f32[2,8,256], index: 3, kind: output, shape index: {}]
  %s4 = sld [smem:[#allocation0]]
  $region45: #{tpu_custom_call.1} parent=0
    _
  %s6 = ssub.s32 1, %s4
  %s7 = scalar_select 0, %s6, %s4
  $region1: #{tpu_custom_call.1} parent=0
    #allocation2 [shape = 'u8[16384]{0}', space=vmem, size = 0x4000, scoped, tag = 'output window, operand 0']
    #allocation3 [shape = 's32[2]{0}', space=sflag, size = 0x8, scoped, tag = 'scoped memory for tpu_custom_call.1']
    %8 = vsyncpa [#allocation3], 0
    %s9 = scalar_lea.sflag [#allocation3], 1
    %10 = vsyncpa %s9, 0
    loop: start=0, step=1, limit=4
    $region2: #{tpu_custom_call.1} parent=1 // loop_pre_header
      _
    $region3: #{tpu_custom_call.1} parent=1 // loop_header
      %s12 = sphi 0, %s16
      %p13 = scmp.ge.s32.totalorder %s12, 4
      %s19 = sphi 0, %s38
      %s20 = sphi 0, %s34
      %s21 = sphi 0, %s30
      %s22 = sphi 0, %s19
      %s23 = sphi 0, %s20
      %s24 = sphi 0, %s21
      %s25 = sphi 0, %s22
      %s26 = sphi 0, %s23
      %s27 = sphi 0, %s24
      %s43 = sphi 0, %s45
      %s46 = sphi 0, %s43
      %s47 = sphi 0, %s46
      %s63 = sphi 0, %s47
      %s69 = sphi 0, %s71
      %s72 = sphi 0, %s69
      %s73 = sphi 0, %s72
      %s89 = sphi 0, %s73
      %s97 = sphi 0, %s99
      %s100 = sphi 0, %s97
      %s101 = sphi 0, %s100
      %s117 = sphi 0, %s101
      %s127 = sphi 0, %s129
      %s130 = sphi 0, %s127
      %s131 = sphi 0, %s130
      %s147 = sphi 0, %s131
    $region4: #{tpu_custom_call.1} parent=1 // loop_header_branch
      %15 = sbr.rel (%p13) target = $region8
    $region5: #{tpu_custom_call.1} parent=1 // loop_body
      %s17 = ssub.s32 %s12, 1
      %s18 = ssub.s32 %s12, 2
      %s28 = sadd.s32 1, %s21
      %p29 = scmp.ge.s32.totalorder %s28, 1
      %s30 = scalar_select %p29, 0, %s28
      %s31 = sadd.s32 1, %s20
      %s32 = scalar_select %p29, %s31, %s20
      %p33 = scmp.ge.s32.totalorder %s32, 2
      %s34 = scalar_select %p33, 0, %s32
      %s35 = sadd.s32 1, %s19
      %s36 = scalar_select %p33, %s35, %s19
      %p37 = scmp.ge.s32.totalorder %s36, 1
      %s38 = scalar_select %p37, 0, %s36
      %s39 = ssub.s32 %s20, %s34
      %s40 = ssub.s32 %s21, %s30
      %s41 = sor.u32 %s39, %s40
      %p42 = scmp.eq.s32.totalorder %s41, 0
      %s44 = sadd.s32 %s43, 1
      %s45 = scalar_select %p42, %s43, %s44
      %p48 = pneg %p42
      %p49 = scmp.eq.s32.totalorder %s12, 1
      %p50 = por %p48, %p49
      %p51 = scmp.ne.s32.totalorder %s43, %s46
      %p52 = scmp.eq.s32.totalorder %s12, 0
      %p53 = por %p51, %p52
      %p54 = scmp.ne.s32.totalorder %s43, %s46
      %p55 = scmp.eq.s32.totalorder %s17, 1
      %p56 = por %p54, %p55
      %p57 = scmp.ne.s32.totalorder %s46, %s47
      %p58 = scmp.eq.s32.totalorder %s17, 0
      %p59 = por %p57, %p58
      %p60 = scmp.ne.s32.totalorder %s46, %s47
      %p61 = scmp.eq.s32.totalorder %s18, 1
      %p62 = por %p60, %p61
      %p64 = scmp.ne.s32.totalorder %s47, %s63
      %p65 = scmp.eq.s32.totalorder %s18, 0
      %p66 = por %p64, %p65
      %s67 = ssub.s32 %s19, %s38
      %p68 = scmp.eq.s32.totalorder %s67, 0
      %s70 = sadd.s32 %s69, 1
      %s71 = scalar_select %p68, %s69, %s70
      %p74 = pneg %p68
      %p75 = scmp.eq.s32.totalorder %s12, 1
      %p76 = por %p74, %p75
      %p77 = scmp.ne.s32.totalorder %s69, %s72
      %p78 = scmp.eq.s32.totalorder %s12, 0
      %p79 = por %p77, %p78
      %p80 = scmp.ne.s32.totalorder %s69, %s72
      %p81 = scmp.eq.s32.totalorder %s17, 1
      %p82 = por %p80, %p81
      %p83 = scmp.ne.s32.totalorder %s72, %s73
      %p84 = scmp.eq.s32.totalorder %s17, 0
      %p85 = por %p83, %p84
      %p86 = scmp.ne.s32.totalorder %s72, %s73
      %p87 = scmp.eq.s32.totalorder %s18, 1
      %p88 = por %p86, %p87
      %p90 = scmp.ne.s32.totalorder %s73, %s89
      %p91 = scmp.eq.s32.totalorder %s18, 0
      %p92 = por %p90, %p91
      %s93 = ssub.s32 %s20, %s34
      %s94 = ssub.s32 %s19, %s38
      %s95 = sor.u32 %s93, %s94
      %p96 = scmp.eq.s32.totalorder %s95, 0
      %s98 = sadd.s32 %s97, 1
      %s99 = scalar_select %p96, %s97, %s98
      %p102 = pneg %p96
      %p103 = scmp.eq.s32.totalorder %s12, 1
      %p104 = por %p102, %p103
      %p105 = scmp.ne.s32.totalorder %s97, %s100
      %p106 = scmp.eq.s32.totalorder %s12, 0
      %p107 = por %p105, %p106
      %p108 = scmp.ne.s32.totalorder %s97, %s100
      %p109 = scmp.eq.s32.totalorder %s17, 1
      %p110 = por %p108, %p109
      %p111 = scmp.ne.s32.totalorder %s100, %s101
      %p112 = scmp.eq.s32.totalorder %s17, 0
      %p113 = por %p111, %p112
      %p114 = scmp.ne.s32.totalorder %s100, %s101
      %p115 = scmp.eq.s32.totalorder %s18, 1
      %p116 = por %p114, %p115
      %p118 = scmp.ne.s32.totalorder %s101, %s117
      %p119 = scmp.eq.s32.totalorder %s18, 0
      %p120 = por %p118, %p119
      %s121 = ssub.s32 %s20, %s34
      %s122 = ssub.s32 %s19, %s38
      %s123 = sor.u32 %s121, %s122
      %s124 = ssub.s32 %s21, %s30
      %s125 = sor.u32 %s123, %s124
      %p126 = scmp.eq.s32.totalorder %s125, 0
      %s128 = sadd.s32 %s127, 1
      %s129 = scalar_select %p126, %s127, %s128
      %p132 = pneg %p126
      %p133 = scmp.eq.s32.totalorder %s12, 1
      %p134 = por %p132, %p133
      %p135 = scmp.ne.s32.totalorder %s127, %s130
      %p136 = scmp.eq.s32.totalorder %s12, 0
      %p137 = por %p135, %p136
      %p138 = scmp.ne.s32.totalorder %s127, %s130
      %p139 = scmp.eq.s32.totalorder %s17, 1
      %p140 = por %p138, %p139
      %p141 = scmp.ne.s32.totalorder %s130, %s131
      %p142 = scmp.eq.s32.totalorder %s17, 0
      %p143 = por %p141, %p142
      %p144 = scmp.ne.s32.totalorder %s130, %s131
      %p145 = scmp.eq.s32.totalorder %s18, 1
      %p146 = por %p144, %p145
      %p148 = scmp.ne.s32.totalorder %s131, %s147
      %p149 = scmp.eq.s32.totalorder %s18, 0
      %p150 = por %p148, %p149
      %p151 = scmp.le.s32.totalorder 1, %s12
      %p152 = scmp.lt.s32.totalorder %s12, 3
      %p153 = pnand %p151, %p152
      %p154 = pneg %p153
      // Predicated region
      $region9: #{tpu_custom_call.1} parent=5 // pred_check
        _
      $region10: #{tpu_custom_call.1} parent=5 // pred_check_branch
        %156 = sbr.rel (%p153) target = $region12
      $region11: #{tpu_custom_call.1} parent=5 // pred_region
        %s157 = ssub.s32 %s12, 1
        // Predicated region
        $region13: #{tpu_custom_call.1} parent=11 // pred_check
          %p158 = pneg %p85
        $region14: #{tpu_custom_call.1} parent=11 // pred_check_branch
          %160 = sbr.rel (%p158) target = $region16
        $region15: #{tpu_custom_call.1} parent=11 // pred_region
          %p161 = scmp.lt.s32.totalorder %s22, 0
          %s162 = scalar_select %p161, %s22, 0
          %s163 = smul.addr %s162, 8
          %s164 = scalar_lea.vmem %s1, %s163
        $region16: #{tpu_custom_call.1} parent=11 // pred_fallthru
          _
      $region12: #{tpu_custom_call.1} parent=5 // pred_fallthru
        _
      %p165 = scmp.lt.s32.totalorder %s12, 2
      // Predicated region
      $region17: #{tpu_custom_call.1} parent=5 // pred_check
        %p166 = pneg %p165
      $region18: #{tpu_custom_call.1} parent=5 // pred_check_branch
        %168 = sbr.rel (%p166) target = $region20
      $region19: #{tpu_custom_call.1} parent=5 // pred_region
        // Predicated region
        $region21: #{tpu_custom_call.1} parent=19 // pred_check
          %p169 = pneg %p53
        $region22: #{tpu_custom_call.1} parent=19 // pred_check_branch
          %171 = sbr.rel (%p169) target = $region24
        $region23: #{tpu_custom_call.1} parent=19 // pred_region
          %s172 = smul.u32 2, %s21
          %p173 = scmp.lt.s32.totalorder %s20, 1
          %s174 = scalar_select %p173, %s20, 1
          %p175 = scmp.lt.s32.totalorder %s172, 1
          %s176 = scalar_select %p175, %s172, 1
          %s177 = smul.addr %s174, 10
          %s178 = sadd.s32 %s176, %s177
          %s179 = smul.addr %s178, 8
          %s180 = scalar_lea.vmem %s0, %s179
          %s181 = smul.u32 2, %s21
        $region24: #{tpu_custom_call.1} parent=19 // pred_fallthru
          _
        // Predicated region
        $region25: #{tpu_custom_call.1} parent=19 // pred_check
          %p182 = pneg %p107
        $region26: #{tpu_custom_call.1} parent=19 // pred_check_branch
          %184 = sbr.rel (%p182) target = $region28
        $region27: #{tpu_custom_call.1} parent=19 // pred_region
          %p185 = scmp.lt.s32.totalorder %s20, 1
          %s186 = scalar_select %p185, %s20, 1
          %p187 = scmp.lt.s32.totalorder %s19, 0
          %s188 = scalar_select %p187, %s19, 0
          %s189 = sadd.s32 %s188, %s186
          %s190 = smul.addr %s189, 8
          %s191 = scalar_lea.vmem %s2, %s190
        $region28: #{tpu_custom_call.1} parent=19 // pred_fallthru
          _
      $region20: #{tpu_custom_call.1} parent=5 // pred_fallthru
        _
      %p192 = scmp.le.s32.totalorder 1, %s12
      %p193 = scmp.lt.s32.totalorder %s12, 3
      %p194 = pnand %p192, %p193
      %p195 = pneg %p194
      // Predicated region
      $region29: #{tpu_custom_call.1} parent=5 // pred_check
        _
      $region30: #{tpu_custom_call.1} parent=5 // pred_check_branch
        %197 = sbr.rel (%p194) target = $region32
      $region31: #{tpu_custom_call.1} parent=5 // pred_region
        %s198 = ssub.s32 %s12, 1
        %s199 = smul.u32 2, %s24
        %p200 = scmp.lt.s32.totalorder %s23, 1
        %s201 = scalar_select %p200, %s23, 1
        %p202 = scmp.lt.s32.totalorder %s199, 1
        %s203 = scalar_select %p202, %s199, 1
        %s204 = smul.addr %s201, 10
        %s205 = sadd.s32 %s203, %s204
        %s206 = smul.addr %s205, 8
        %s207 = scalar_lea.vmem %s0, %s206
        %p208 = pneg %p59
        %p209 = pneg %p56
        %p210 = scmp.lt.s32.totalorder %s22, 0
        %s211 = scalar_select %p210, %s22, 0
        %s212 = smul.addr %s211, 8
        %s213 = scalar_lea.vmem %s1, %s212
        %p214 = pneg %p85
        %p215 = pneg %p82
        %p216 = scmp.lt.s32.totalorder %s23, 1
        %s217 = scalar_select %p216, %s23, 1
        %p218 = scmp.lt.s32.totalorder %s22, 0
        %s219 = scalar_select %p218, %s22, 0
        %s220 = sadd.s32 %s219, %s217
        %s221 = smul.addr %s220, 8
        %s222 = scalar_lea.vmem %s2, %s221
        %p223 = pneg %p113
        %p224 = pneg %p110
        %p225 = pneg %p143
        %p226 = pneg %p140
        %s227 = sand.u32 %s130, 1
        %s228 = scalar_lea.sflag [#allocation3], %s227
        %s229 = sand.u32 %s130, 1
        %s230 = smul.addr %s229, 16
        %s231 = scalar_lea.vmem [#allocation2], %s230
        %s232 = smul.u32 2, %s24
        %p233 = scmp.lt.s32.totalorder %s23, 1
        %s234 = scalar_select %p233, %s23, 1
        %p235 = scmp.lt.s32.totalorder %s232, 1
        %s236 = scalar_select %p235, %s232, 1
        %s237 = smul.addr %s234, 10
        %s238 = sadd.s32 %s236, %s237
        %s239 = smul.addr %s238, 8
        %s240 = scalar_lea.vmem %s0, %s239
        %s241 = smul.u32 2, %s24
        %p242 = scmp.lt.s32.totalorder %s22, 0
        %s243 = scalar_select %p242, %s22, 0
        %s244 = smul.addr %s243, 8
        %s245 = scalar_lea.vmem %s1, %s244
        %p246 = scmp.lt.s32.totalorder %s23, 1
        %s247 = scalar_select %p246, %s23, 1
        %p248 = scmp.lt.s32.totalorder %s22, 0
        %s249 = scalar_select %p248, %s22, 0
        %s250 = sadd.s32 %s249, %s247
        %s251 = smul.addr %s250, 8
        %s252 = scalar_lea.vmem %s2, %s251
        %s253 = smul.u32 2, %s24
        %v254 = vld [vmem:[%s245] sm:$0xff]
        %v255 = vld [vmem:[%s240] sm:$0xff]
        %v256 = vld [vmem:[%s240 + $0x8] sm:$0xff]
        %v257 = vld [vmem:[%s240 + $0x10] sm:$0xff]
        %v258 = vld [vmem:[%s240 + $0x18] sm:$0xff]
        %v259 = vld [vmem:[%s240 + $0x20] sm:$0xff]
        %v260 = vld [vmem:[%s240 + $0x28] sm:$0xff]
        %v261 = vld [vmem:[%s240 + $0x30] sm:$0xff]
        %v262 = vld [vmem:[%s240 + $0x38] sm:$0xff]
        %v263 = vld [vmem:[%s240 + $0x40] sm:$0xf]
        %v264 = vld [vmem:[%s240 + $0x48] sm:$0xf]
        %vm265 = vcmask 293888
        %v267 = vsel %vm265, %v254, 0
        %vm269 = vcmask 1043456
        %v271 = vsel %vm269, %v263, 0
        %v274 = vsel %vm269, %v264, 0
        %276 = vmatpush.msra.mxu0 0.0
        %277 = vmatpush.msra.mxu0 0.0
        %278 = vmatpush.msra.mxu0 0.0
        %279 = vmatpush.msra.mxu0 0.0
        %280 = vmatpush.msra.mxu0 0.0
        %281 = vmatpush.msra.mxu0 0.0
        %282 = vmatpush.msra.mxu0 0.0
        %283 = vmatpush.msra.mxu0 0.0
        %284 = vmatpush.msra.mxu0 0.0
        %285 = vmatpush.msra.mxu0 0.0
        %286 = vmatpush.msra.mxu0 0.0
        %287 = vmatpush.msra.mxu0 %v271
        %288 = vmatpush.msra.mxu0 %v261
        %289 = vmatpush.msra.mxu0 %v259
        %290 = vmatpush.msra.mxu0 %v257
        %291 = vmatpush.msra.mxu0 %v255
        %292 = vmatmul.f32.gmra.mxu0 %v267
        %v293 = vpop.f32.mrf.mxu0
        %v294 = vadd.f32 0.0, %v293
        %295 = vdwg.mxu0
        %296 = vmatpush.msra.mxu0 0.0
        %297 = vmatpush.msra.mxu0 0.0
        %298 = vmatpush.msra.mxu0 0.0
        %299 = vmatpush.msra.mxu0 0.0
        %300 = vmatpush.msra.mxu0 0.0
        %301 = vmatpush.msra.mxu0 0.0
        %302 = vmatpush.msra.mxu0 0.0
        %303 = vmatpush.msra.mxu0 0.0
        %304 = vmatpush.msra.mxu0 0.0
        %305 = vmatpush.msra.mxu0 0.0
        %306 = vmatpush.msra.mxu0 0.0
        %307 = vmatpush.msra.mxu0 %v274
        %308 = vmatpush.msra.mxu0 %v262
        %309 = vmatpush.msra.mxu0 %v260
        %310 = vmatpush.msra.mxu0 %v258
        %311 = vmatpush.msra.mxu0 %v256
        %312 = vmatmul.f32.gmra.mxu0 %v267
        %v313 = vpop.f32.mrf.mxu0
        %v314 = vadd.f32 0.0, %v313
        %315 = vdwg.mxu0
        %v316 = vld [vmem:[%s252] sm:$0xff]
        %318 = vset.pattern.permute.xlu0 0
        %319 = vperm.xlu0 %318, %v316
        %v320 = vpop.permute.xlu0 %319
        %v322 = vmul.f32 %v294, %v320
        %v323 = vmul.f32 %v314, %v320
        %324 = vst [vmem:[%s231] sm:$0xff] %v322
        %325 = vst [vmem:[%s231 + $0x8] sm:$0xff] %v323
        %s326 = sand.u32 %s130, 1
        %s327 = scalar_lea.sflag [#allocation3], %s326
        %s328 = sand.u32 %s130, 1
        %s329 = smul.addr %s328, 16
        %s330 = scalar_lea.vmem [#allocation2], %s329
        // Predicated region
        $region33: #{tpu_custom_call.1} parent=31 // pred_check
          %p331 = pneg %p140
        $region34: #{tpu_custom_call.1} parent=31 // pred_check_branch
          %333 = sbr.rel (%p331) target = $region36
        $region35: #{tpu_custom_call.1} parent=31 // pred_region
          %s334 = smul.u32 2, %s24
          %336 = vsyncadd %s327, 0
          %s337 = smul.addr %s22, 2
          %s338 = sadd.s32 %s334, %s337
          %s339 = smul.addr %s23, 2
          %s340 = sadd.s32 %s338, %s339
          %s341 = smul.addr %s340, 8
          %s342 = scalar_lea.hbm %s3, %s341
          %s344 = sshll.u32 %s330, 4
          %s345 = int_to_ptr.vmem [resolvable:$true] %s344
          %s346 = sshll.u32 %s342, 4
          %s347 = int_to_ptr.hbm [resolvable:$true] %s346
          %349 = dma.vmem_to_hbm [thread:$0]  %s345, 256, %s347, %s327
        $region36: #{tpu_custom_call.1} parent=31 // pred_fallthru
          _
      $region32: #{tpu_custom_call.1} parent=5 // pred_fallthru
        _
      %p350 = scmp.le.s32.totalorder 2, %s12
      // Predicated region
      $region37: #{tpu_custom_call.1} parent=5 // pred_check
        %p351 = pneg %p350
      $region38: #{tpu_custom_call.1} parent=5 // pred_check_branch
        %353 = sbr.rel (%p351) target = $region40
      $region39: #{tpu_custom_call.1} parent=5 // pred_region
        %s354 = ssub.s32 %s12, 2
        // Predicated region
        $region41: #{tpu_custom_call.1} parent=39 // pred_check
          %p355 = pneg %p146
        $region42: #{tpu_custom_call.1} parent=39 // pred_check_branch
          %357 = sbr.rel (%p355) target = $region44
        $region43: #{tpu_custom_call.1} parent=39 // pred_region
          %s358 = sand.u32 %s131, 1
          %s359 = scalar_lea.sflag [#allocation3], %s358
          %s360 = sand.u32 %s131, 1
          %s361 = smul.addr %s360, 16
          %s362 = scalar_lea.vmem [#allocation2], %s361
          %364 = dma.done %s359, 256
        $region44: #{tpu_custom_call.1} parent=39 // pred_fallthru
          _
      $region40: #{tpu_custom_call.1} parent=5 // pred_fallthru
        _
    $region6: #{tpu_custom_call.1} parent=1 // loop_footer
      %s16 = sadd.s32 1, %s12
    $region7: #{tpu_custom_call.1} parent=1 // loop_footer_branch
      %11 = sbr.rel target = $region3
    $region8: #{tpu_custom_call.1} parent=1 // loop_exit
      _
    %365 = vsyncpa [#allocation3], 1
    %s366 = scalar_lea.sflag [#allocation3], 1
    %367 = vsyncpa %s366, 1

</llo_original>
